<compile_context>
chip_gen: v6e
topology: v6e:2x2x1
jax: 0.10.0
libtpu: 0.0.40
codegen_flags: <defaults>
</compile_context>

<pallas_src>
import math
import functools

import jax
import jax.numpy as jnp
from jax.experimental import pallas as pl
from jax.experimental.pallas import tpu as pltpu


def _round_up(x, m):
    return ((x + m - 1) // m) * m


def policy_net_kernel(x_ref, w1_ref, b1_ref, w2_ref, b2_ref, w3_ref, b3_ref, o_ref):
    # x_ref: [state_dim, TB] bf16 (batch on lanes)
    # wN_ref: [out, in] bf16 (PyTorch layout), bN_ref: [out, 1] f32
    # o_ref: [action_dim, TB] f32
    x = x_ref[...]
    # fc1 + relu (MXU bf16 -> f32 accumulate; bias/relu in f32 on VPU)
    h1 = jnp.dot(w1_ref[...], x, preferred_element_type=jnp.float32) + b1_ref[...]
    h1 = jnp.maximum(h1, 0.0).astype(jnp.bfloat16)
    # fc2 + relu
    h2 = jnp.dot(w2_ref[...], h1, preferred_element_type=jnp.float32) + b2_ref[...]
    h2 = jnp.maximum(h2, 0.0).astype(jnp.bfloat16)
    # fc3 (no activation)
    o_ref[...] = jnp.dot(w3_ref[...], h2, preferred_element_type=jnp.float32) + b3_ref[...]


@functools.partial(jax.jit, static_argnames=("tile_b",))
def policy_net_forward(x, params, *, tile_b=512):
    """x: [B, state_dim] float32. params in PyTorch layout (w:[out,in], b:[out]).
    Returns [B, action_dim] float32."""
    w1, b1, w2, b2, w3, b3 = params
    B, state_dim = x.shape
    hidden = w1.shape[0]
    action_dim = w3.shape[0]

    assert tile_b % 128 == 0, "batch tile must be a multiple of 128 lanes"
    tb = min(tile_b, _round_up(B, 128))
    padded_B = _round_up(B, tb)
    grid = (padded_B // tb,)

    # Feature-major + bf16 operands; pad batch up to a whole number of tiles
    # (zero padding -> finite values flow through, padded columns sliced off).
    x_fm = jnp.pad(x.T.astype(jnp.bfloat16), ((0, 0), (0, padded_B - B)))
    w1b = w1.astype(jnp.bfloat16)
    w2b = w2.astype(jnp.bfloat16)
    w3b = w3.astype(jnp.bfloat16)
    b1c = b1.astype(jnp.float32).reshape(hidden, 1)
    b2c = b2.astype(jnp.float32).reshape(hidden, 1)
    b3c = b3.astype(jnp.float32).reshape(action_dim, 1)

    # Weights/biases: full-array blocks with a constant index_map -> VMEM-resident,
    # DMA'd only once across the whole batch grid.
    resident = lambda a: pl.BlockSpec(a.shape, lambda i: (0, 0))

    out_fm = pl.pallas_call(
        policy_net_kernel,
        out_shape=jax.ShapeDtypeStruct((action_dim, padded_B), jnp.float32),
        grid=grid,
        in_specs=[
            pl.BlockSpec((state_dim, tb), lambda i: (0, i)),   # activations: tiled over batch
            resident(w1b), resident(b1c),
            resident(w2b), resident(b2c),
            resident(w3b), resident(b3c),
        ],
        out_specs=pl.BlockSpec((action_dim, tb), lambda i: (0, i)),
        compiler_params=pltpu.CompilerParams(
            dimension_semantics=("parallel",),   # v7x megacore shards batch tiles
        ),
    )(x_fm, w1b, b1c, w2b, b2c, w3b, b3c)

    # back to PyTorch-style [B, action_dim]
    return out_fm[:, :B].T


def init_policy_net_params(key, state_dim, action_dim, hidden=64):
    """PyTorch nn.Linear default init: U(-1/sqrt(fan_in), 1/sqrt(fan_in)).
    Weights in PyTorch-native [out, in] layout, biases [out]."""
    keys = jax.random.split(key, 6)

    def linear(kw, kb, fan_in, fan_out):
        bound = 1.0 / math.sqrt(fan_in)
        w = jax.random.uniform(kw, (fan_out, fan_in), jnp.float32, -bound, bound)
        b = jax.random.uniform(kb, (fan_out,), jnp.float32, -bound, bound)
        return w, b

    w1, b1 = linear(keys[0], keys[1], state_dim, hidden)
    w2, b2 = linear(keys[2], keys[3], hidden, hidden)
    w3, b3 = linear(keys[4], keys[5], hidden, action_dim)
    return (w1, b1, w2, b2, w3, b3)


def reference_forward(x, params):
    """Precision-matched reference: bf16 matmul operands, f32 accumulation/bias/ReLU."""
    w1, b1, w2, b2, w3, b3 = params
    h = x.astype(jnp.bfloat16)
    h = jnp.maximum(
        jnp.dot(h, w1.T.astype(jnp.bfloat16), preferred_element_type=jnp.float32) + b1, 0.0)
    h = jnp.maximum(
        jnp.dot(h.astype(jnp.bfloat16), w2.T.astype(jnp.bfloat16),
                preferred_element_type=jnp.float32) + b2, 0.0)
    return jnp.dot(h.astype(jnp.bfloat16), w3.T.astype(jnp.bfloat16),
                   preferred_element_type=jnp.float32) + b3


if __name__ == "__main__":
    key = jax.random.PRNGKey(0)
    k_x, k_p = jax.random.split(key)

    # Small test shapes; tile_b=128 + batch=192 exercises padding and a 2-step grid.
    batch, state_dim, action_dim = 192, 4, 2
    x = jax.random.normal(k_x, (batch, state_dim), jnp.float32)
    params = init_policy_net_params(k_p, state_dim, action_dim)

    out = policy_net_forward(x, params, tile_b=128)
    out = jax.block_until_ready(out)

    ref = reference_forward(x, params)
    assert out.shape == (batch, action_dim)
    assert jnp.allclose(out, ref, atol=2e-3, rtol=2e-3), "mismatch vs reference"

    print("KERNEL_OK")
</pallas_src>

<mosaic_0001>
module attributes {stable_mosaic.version = 11 : i64} {
  func.func @policy_net_kernel(%arg0: i32, %arg1: memref<4x128xbf16, #tpu.memory_space<vmem>>, %arg2: memref<64x4xbf16, #tpu.memory_space<vmem>>, %arg3: memref<64x1xf32, #tpu.memory_space<vmem>>, %arg4: memref<64x64xbf16, #tpu.memory_space<vmem>>, %arg5: memref<64x1xf32, #tpu.memory_space<vmem>>, %arg6: memref<2x64xbf16, #tpu.memory_space<vmem>>, %arg7: memref<2x1xf32, #tpu.memory_space<vmem>>, %arg8: memref<2x128xf32, #tpu.memory_space<vmem>>) attributes {dimension_semantics = [#tpu.dimension_semantics<parallel>], iteration_bounds = array<i64: 2>, scalar_prefetch = 0 : i64, scratch_operands = 0 : i64, tpu.core_type = #tpu.core_type<tc>, window_params = [{transform_indices = @transform_0, window_bounds = array<i64: 4, 128>}, {pipeline_mode = #tpu.pipeline_mode<synchronous>, transform_indices = @transform_1, window_bounds = array<i64: 64, 4>}, {pipeline_mode = #tpu.pipeline_mode<synchronous>, transform_indices = @transform_2, window_bounds = array<i64: 64, 1>}, {pipeline_mode = #tpu.pipeline_mode<synchronous>, transform_indices = @transform_3, window_bounds = array<i64: 64, 64>}, {pipeline_mode = #tpu.pipeline_mode<synchronous>, transform_indices = @transform_4, window_bounds = array<i64: 64, 1>}, {pipeline_mode = #tpu.pipeline_mode<synchronous>, transform_indices = @transform_5, window_bounds = array<i64: 2, 64>}, {pipeline_mode = #tpu.pipeline_mode<synchronous>, transform_indices = @transform_6, window_bounds = array<i64: 2, 1>}, {transform_indices = @transform_7, window_bounds = array<i64: 2, 128>}]} {
    %c0 = arith.constant 0 : index
    %c0_0 = arith.constant 0 : index
    %0 = vector.load %arg1[%c0, %c0_0] : memref<4x128xbf16, #tpu.memory_space<vmem>>, vector<4x128xbf16>
    %c0_1 = arith.constant 0 : index
    %c0_2 = arith.constant 0 : index
    %1 = vector.load %arg2[%c0_1, %c0_2] : memref<64x4xbf16, #tpu.memory_space<vmem>>, vector<64x4xbf16>
    %cst = arith.constant dense<0.000000e+00> : vector<64x128xf32>
    %2 = tpu.matmul %1, %0, %cst {dimension_numbers = #tpu.dot_dimension_numbers<[1], [0], [0], [1], [0, 0, 1, 1], [], []>} : vector<64x4xbf16>, vector<4x128xbf16>, vector<64x128xf32> -> vector<64x128xf32>
    %c0_3 = arith.constant 0 : index
    %c0_4 = arith.constant 0 : index
    %3 = vector.load %arg3[%c0_3, %c0_4] : memref<64x1xf32, #tpu.memory_space<vmem>>, vector<64x1xf32>
    %4 = vector.broadcast %3 : vector<64x1xf32> to vector<64x128xf32>
    %5 = arith.addf %2, %4 : vector<64x128xf32>
    %cst_5 = arith.constant 0.000000e+00 : f32
    %6 = vector.broadcast %cst_5 : f32 to vector<64x128xf32>
    %7 = arith.maximumf %5, %6 : vector<64x128xf32>
    %8 = arith.truncf %7 : vector<64x128xf32> to vector<64x128xbf16>
    %c0_6 = arith.constant 0 : index
    %c0_7 = arith.constant 0 : index
    %9 = vector.load %arg4[%c0_6, %c0_7] : memref<64x64xbf16, #tpu.memory_space<vmem>>, vector<64x64xbf16>
    %cst_8 = arith.constant dense<0.000000e+00> : vector<64x128xf32>
    %10 = tpu.matmul %9, %8, %cst_8 {dimension_numbers = #tpu.dot_dimension_numbers<[1], [0], [0], [1], [0, 0, 1, 1], [], []>} : vector<64x64xbf16>, vector<64x128xbf16>, vector<64x128xf32> -> vector<64x128xf32>
    %c0_9 = arith.constant 0 : index
    %c0_10 = arith.constant 0 : index
    %11 = vector.load %arg5[%c0_9, %c0_10] : memref<64x1xf32, #tpu.memory_space<vmem>>, vector<64x1xf32>
    %12 = vector.broadcast %11 : vector<64x1xf32> to vector<64x128xf32>
    %13 = arith.addf %10, %12 : vector<64x128xf32>
    %cst_11 = arith.constant 0.000000e+00 : f32
    %14 = vector.broadcast %cst_11 : f32 to vector<64x128xf32>
    %15 = arith.maximumf %13, %14 : vector<64x128xf32>
    %16 = arith.truncf %15 : vector<64x128xf32> to vector<64x128xbf16>
    %c0_12 = arith.constant 0 : index
    %c0_13 = arith.constant 0 : index
    %17 = vector.load %arg6[%c0_12, %c0_13] : memref<2x64xbf16, #tpu.memory_space<vmem>>, vector<2x64xbf16>
    %cst_14 = arith.constant dense<0.000000e+00> : vector<2x128xf32>
    %18 = tpu.matmul %17, %16, %cst_14 {dimension_numbers = #tpu.dot_dimension_numbers<[1], [0], [0], [1], [0, 0, 1, 1], [], []>} : vector<2x64xbf16>, vector<64x128xbf16>, vector<2x128xf32> -> vector<2x128xf32>
    %c0_15 = arith.constant 0 : index
    %c0_16 = arith.constant 0 : index
    %19 = vector.load %arg7[%c0_15, %c0_16] : memref<2x1xf32, #tpu.memory_space<vmem>>, vector<2x1xf32>
    %20 = vector.broadcast %19 : vector<2x1xf32> to vector<2x128xf32>
    %21 = arith.addf %18, %20 : vector<2x128xf32>
    %c0_17 = arith.constant 0 : index
    %c0_18 = arith.constant 0 : index
    %22 = vector.load %arg8[%c0_17, %c0_18] : memref<2x128xf32, #tpu.memory_space<vmem>>, vector<2x128xf32>
    tpu.vector_store %arg8[%c0_17, %c0_18], %21 {strides = array<i32>} : memref<2x128xf32, #tpu.memory_space<vmem>>, vector<2x128xf32>,
    return
  }
  func.func @transform_0(%arg0: i32) -> (i32, i32) {
    %c0_i32 = arith.constant 0 : i32
    %c0_i32_0 = arith.constant 0 : i32
    return %c0_i32, %arg0 : i32, i32
  }
  func.func @transform_1(%arg0: i32) -> (i32, i32) {
    %c0_i32 = arith.constant 0 : i32
    %c0_i32_0 = arith.constant 0 : i32
    %c0_i32_1 = arith.constant 0 : i32
    return %c0_i32, %c0_i32_0 : i32, i32
  }
  func.func @transform_2(%arg0: i32) -> (i32, i32) {
    %c0_i32 = arith.constant 0 : i32
    %c0_i32_0 = arith.constant 0 : i32
    %c0_i32_1 = arith.constant 0 : i32
    return %c0_i32, %c0_i32_0 : i32, i32
  }
  func.func @transform_3(%arg0: i32) -> (i32, i32) {
    %c0_i32 = arith.constant 0 : i32
    %c0_i32_0 = arith.constant 0 : i32
    %c0_i32_1 = arith.constant 0 : i32
    return %c0_i32, %c0_i32_0 : i32, i32
  }
  func.func @transform_4(%arg0: i32) -> (i32, i32) {
    %c0_i32 = arith.constant 0 : i32
    %c0_i32_0 = arith.constant 0 : i32
    %c0_i32_1 = arith.constant 0 : i32
    return %c0_i32, %c0_i32_0 : i32, i32
  }
  func.func @transform_5(%arg0: i32) -> (i32, i32) {
    %c0_i32 = arith.constant 0 : i32
    %c0_i32_0 = arith.constant 0 : i32
    %c0_i32_1 = arith.constant 0 : i32
    return %c0_i32, %c0_i32_0 : i32, i32
  }
  func.func @transform_6(%arg0: i32) -> (i32, i32) {
    %c0_i32 = arith.constant 0 : i32
    %c0_i32_0 = arith.constant 0 : i32
    %c0_i32_1 = arith.constant 0 : i32
    return %c0_i32, %c0_i32_0 : i32, i32
  }
  func.func @transform_7(%arg0: i32) -> (i32, i32) {
    %c0_i32 = arith.constant 0 : i32
    %c0_i32_0 = arith.constant 0 : i32
    return %c0_i32, %arg0 : i32, i32
  }
}

</mosaic_0001>

<llo_original>
// kernel: policy_net_forward.1
$region0: #{policy_net_forward.1}
  #allocation0 [shape = 'u32[]', space=smem, size = 0x4, offset = 0x4, fixed_abs, tag = 'smem constant byte address 0x4 - core index']
  #allocation1 [shape = 'u32[144,128]{1,0:T(1,128)}', space=vmem, size = 0x12000, scoped, tag = 'internal scratch']
  %s0 = inlined_call_operand.vmem [shape: bf16[4,256], index: 0, kind: input, shape index: {}]
  %s1 = inlined_call_operand.vmem [shape: bf16[64,4], index: 1, kind: input, shape index: {}]
  %s2 = inlined_call_operand.vmem [shape: f32[64,1], index: 2, kind: input, shape index: {}]
  %s3 = inlined_call_operand.vmem [shape: bf16[64,64], index: 3, kind: input, shape index: {}]
  %s4 = inlined_call_operand.vmem [shape: f32[64,1], index: 4, kind: input, shape index: {}]
  %s5 = inlined_call_operand.vmem [shape: bf16[2,64], index: 5, kind: input, shape index: {}]
  %s6 = inlined_call_operand.vmem [shape: f32[2,1], index: 6, kind: input, shape index: {}]
  %s7 = inlined_call_operand.vmem [shape: f32[2,256], index: 7, kind: output, shape index: {}]
  %s8 = sld [smem:[#allocation0]]
  $region61: #{policy_net_forward.1} parent=0
    _
  %s10 = ssub.s32 1, %s8
  %s11 = scalar_select 0, %s10, %s8
  loop: start=0, step=1, limit=4
  $region2: #{policy_net_forward.1} parent=0 // loop_pre_header
    _
  $region3: #{policy_net_forward.1} parent=0 // loop_header
    %s13 = sphi 0, %s17
    %p14 = scmp.ge.s32.totalorder %s13, 4
    %s23 = sphi 0, %s25
    %s26 = sphi 0, %s23
    %s27 = sphi 0, %s26
    %s43 = sphi 0, %s27
    %s47 = sphi 0, %s47
    %s49 = sphi 0, %s47
    %s50 = sphi 0, %s49
    %s64 = sphi 0, %s50
    %s68 = sphi 0, %s68
    %s70 = sphi 0, %s68
    %s71 = sphi 0, %s70
    %s85 = sphi 0, %s71
    %s89 = sphi 0, %s89
    %s91 = sphi 0, %s89
    %s92 = sphi 0, %s91
    %s106 = sphi 0, %s92
    %s110 = sphi 0, %s110
    %s112 = sphi 0, %s110
    %s113 = sphi 0, %s112
    %s127 = sphi 0, %s113
    %s131 = sphi 0, %s131
    %s133 = sphi 0, %s131
    %s134 = sphi 0, %s133
    %s148 = sphi 0, %s134
    %s152 = sphi 0, %s152
    %s154 = sphi 0, %s152
    %s155 = sphi 0, %s154
    %s169 = sphi 0, %s155
    %s175 = sphi 0, %s177
    %s178 = sphi 0, %s175
    %s179 = sphi 0, %s178
    %s195 = sphi 0, %s179
  $region4: #{policy_net_forward.1} parent=0 // loop_header_branch
    %16 = sbr.rel (%p14) target = $region8
  $region5: #{policy_net_forward.1} parent=0 // loop_body
    %s18 = ssub.s32 %s13, 1
    %s19 = ssub.s32 %s13, 2
    %s20 = sadd.s32 %s13, 1
    %s21 = ssub.s32 %s13, %s20
    %p22 = scmp.eq.s32.totalorder %s21, 0
    %s24 = sadd.s32 %s23, 1
    %s25 = scalar_select %p22, %s23, %s24
    %p28 = pneg %p22
    %p29 = scmp.eq.s32.totalorder %s13, 1
    %p30 = por %p28, %p29
    %p31 = scmp.ne.s32.totalorder %s23, %s26
    %p32 = scmp.eq.s32.totalorder %s13, 0
    %p33 = por %p31, %p32
    %p34 = scmp.ne.s32.totalorder %s23, %s26
    %p35 = scmp.eq.s32.totalorder %s18, 1
    %p36 = por %p34, %p35
    %p37 = scmp.ne.s32.totalorder %s26, %s27
    %p38 = scmp.eq.s32.totalorder %s18, 0
    %p39 = por %p37, %p38
    %p40 = scmp.ne.s32.totalorder %s26, %s27
    %p41 = scmp.eq.s32.totalorder %s19, 1
    %p42 = por %p40, %p41
    %p44 = scmp.ne.s32.totalorder %s27, %s43
    %p45 = scmp.eq.s32.totalorder %s19, 0
    %p46 = por %p44, %p45
    %s48 = sadd.s32 %s47, 1
    %p51 = scmp.eq.s32.totalorder %s13, 1
    %p52 = scmp.ne.s32.totalorder %s47, %s49
    %p53 = scmp.eq.s32.totalorder %s13, 0
    %p54 = por %p52, %p53
    %p55 = scmp.ne.s32.totalorder %s47, %s49
    %p56 = scmp.eq.s32.totalorder %s18, 1
    %p57 = por %p55, %p56
    %p58 = scmp.ne.s32.totalorder %s49, %s50
    %p59 = scmp.eq.s32.totalorder %s18, 0
    %p60 = por %p58, %p59
    %p61 = scmp.ne.s32.totalorder %s49, %s50
    %p62 = scmp.eq.s32.totalorder %s19, 1
    %p63 = por %p61, %p62
    %p65 = scmp.ne.s32.totalorder %s50, %s64
    %p66 = scmp.eq.s32.totalorder %s19, 0
    %p67 = por %p65, %p66
    %s69 = sadd.s32 %s68, 1
    %p72 = scmp.eq.s32.totalorder %s13, 1
    %p73 = scmp.ne.s32.totalorder %s68, %s70
    %p74 = scmp.eq.s32.totalorder %s13, 0
    %p75 = por %p73, %p74
    %p76 = scmp.ne.s32.totalorder %s68, %s70
    %p77 = scmp.eq.s32.totalorder %s18, 1
    %p78 = por %p76, %p77
    %p79 = scmp.ne.s32.totalorder %s70, %s71
    %p80 = scmp.eq.s32.totalorder %s18, 0
    %p81 = por %p79, %p80
    %p82 = scmp.ne.s32.totalorder %s70, %s71
    %p83 = scmp.eq.s32.totalorder %s19, 1
    %p84 = por %p82, %p83
    %p86 = scmp.ne.s32.totalorder %s71, %s85
    %p87 = scmp.eq.s32.totalorder %s19, 0
    %p88 = por %p86, %p87
    %s90 = sadd.s32 %s89, 1
    %p93 = scmp.eq.s32.totalorder %s13, 1
    %p94 = scmp.ne.s32.totalorder %s89, %s91
    %p95 = scmp.eq.s32.totalorder %s13, 0
    %p96 = por %p94, %p95
    %p97 = scmp.ne.s32.totalorder %s89, %s91
    %p98 = scmp.eq.s32.totalorder %s18, 1
    %p99 = por %p97, %p98
    %p100 = scmp.ne.s32.totalorder %s91, %s92
    %p101 = scmp.eq.s32.totalorder %s18, 0
    %p102 = por %p100, %p101
    %p103 = scmp.ne.s32.totalorder %s91, %s92
    %p104 = scmp.eq.s32.totalorder %s19, 1
    %p105 = por %p103, %p104
    %p107 = scmp.ne.s32.totalorder %s92, %s106
    %p108 = scmp.eq.s32.totalorder %s19, 0
    %p109 = por %p107, %p108
    %s111 = sadd.s32 %s110, 1
    %p114 = scmp.eq.s32.totalorder %s13, 1
    %p115 = scmp.ne.s32.totalorder %s110, %s112
    %p116 = scmp.eq.s32.totalorder %s13, 0
    %p117 = por %p115, %p116
    %p118 = scmp.ne.s32.totalorder %s110, %s112
    %p119 = scmp.eq.s32.totalorder %s18, 1
    %p120 = por %p118, %p119
    %p121 = scmp.ne.s32.totalorder %s112, %s113
    %p122 = scmp.eq.s32.totalorder %s18, 0
    %p123 = por %p121, %p122
    %p124 = scmp.ne.s32.totalorder %s112, %s113
    %p125 = scmp.eq.s32.totalorder %s19, 1
    %p126 = por %p124, %p125
    %p128 = scmp.ne.s32.totalorder %s113, %s127
    %p129 = scmp.eq.s32.totalorder %s19, 0
    %p130 = por %p128, %p129
    %s132 = sadd.s32 %s131, 1
    %p135 = scmp.eq.s32.totalorder %s13, 1
    %p136 = scmp.ne.s32.totalorder %s131, %s133
    %p137 = scmp.eq.s32.totalorder %s13, 0
    %p138 = por %p136, %p137
    %p139 = scmp.ne.s32.totalorder %s131, %s133
    %p140 = scmp.eq.s32.totalorder %s18, 1
    %p141 = por %p139, %p140
    %p142 = scmp.ne.s32.totalorder %s133, %s134
    %p143 = scmp.eq.s32.totalorder %s18, 0
    %p144 = por %p142, %p143
    %p145 = scmp.ne.s32.totalorder %s133, %s134
    %p146 = scmp.eq.s32.totalorder %s19, 1
    %p147 = por %p145, %p146
    %p149 = scmp.ne.s32.totalorder %s134, %s148
    %p150 = scmp.eq.s32.totalorder %s19, 0
    %p151 = por %p149, %p150
    %s153 = sadd.s32 %s152, 1
    %p156 = scmp.eq.s32.totalorder %s13, 1
    %p157 = scmp.ne.s32.totalorder %s152, %s154
    %p158 = scmp.eq.s32.totalorder %s13, 0
    %p159 = por %p157, %p158
    %p160 = scmp.ne.s32.totalorder %s152, %s154
    %p161 = scmp.eq.s32.totalorder %s18, 1
    %p162 = por %p160, %p161
    %p163 = scmp.ne.s32.totalorder %s154, %s155
    %p164 = scmp.eq.s32.totalorder %s18, 0
    %p165 = por %p163, %p164
    %p166 = scmp.ne.s32.totalorder %s154, %s155
    %p167 = scmp.eq.s32.totalorder %s19, 1
    %p168 = por %p166, %p167
    %p170 = scmp.ne.s32.totalorder %s155, %s169
    %p171 = scmp.eq.s32.totalorder %s19, 0
    %p172 = por %p170, %p171
    %s173 = ssub.s32 %s13, %s20
    %p174 = scmp.eq.s32.totalorder %s173, 0
    %s176 = sadd.s32 %s175, 1
    %s177 = scalar_select %p174, %s175, %s176
    %p180 = pneg %p174
    %p181 = scmp.eq.s32.totalorder %s13, 1
    %p182 = por %p180, %p181
    %p183 = scmp.ne.s32.totalorder %s175, %s178
    %p184 = scmp.eq.s32.totalorder %s13, 0
    %p185 = por %p183, %p184
    %p186 = scmp.ne.s32.totalorder %s175, %s178
    %p187 = scmp.eq.s32.totalorder %s18, 1
    %p188 = por %p186, %p187
    %p189 = scmp.ne.s32.totalorder %s178, %s179
    %p190 = scmp.eq.s32.totalorder %s18, 0
    %p191 = por %p189, %p190
    %p192 = scmp.ne.s32.totalorder %s178, %s179
    %p193 = scmp.eq.s32.totalorder %s19, 1
    %p194 = por %p192, %p193
    %p196 = scmp.ne.s32.totalorder %s179, %s195
    %p197 = scmp.eq.s32.totalorder %s19, 0
    %p198 = por %p196, %p197
    %p199 = scmp.le.s32.totalorder 1, %s13
    %p200 = scmp.lt.s32.totalorder %s13, 3
    %p201 = pnand %p199, %p200
    %p202 = pneg %p201
    // Predicated region
    $region9: #{policy_net_forward.1} parent=5 // pred_check
      _
    $region10: #{policy_net_forward.1} parent=5 // pred_check_branch
      %204 = sbr.rel (%p201) target = $region12
    $region11: #{policy_net_forward.1} parent=5 // pred_region
      %s205 = ssub.s32 %s13, 1
      // Predicated region
      $region13: #{policy_net_forward.1} parent=11 // pred_check
        %p206 = pneg %p60
      $region14: #{policy_net_forward.1} parent=11 // pred_check_branch
        %208 = sbr.rel (%p206) target = $region16
      $region15: #{policy_net_forward.1} parent=11 // pred_region
        _
      $region16: #{policy_net_forward.1} parent=11 // pred_fallthru
        _
      // Predicated region
      $region17: #{policy_net_forward.1} parent=11 // pred_check
        %p209 = pneg %p81
      $region18: #{policy_net_forward.1} parent=11 // pred_check_branch
        %211 = sbr.rel (%p209) target = $region20
      $region19: #{policy_net_forward.1} parent=11 // pred_region
        _
      $region20: #{policy_net_forward.1} parent=11 // pred_fallthru
        _
      // Predicated region
      $region21: #{policy_net_forward.1} parent=11 // pred_check
        %p212 = pneg %p102
      $region22: #{policy_net_forward.1} parent=11 // pred_check_branch
        %214 = sbr.rel (%p212) target = $region24
      $region23: #{policy_net_forward.1} parent=11 // pred_region
        _
      $region24: #{policy_net_forward.1} parent=11 // pred_fallthru
        _
      // Predicated region
      $region25: #{policy_net_forward.1} parent=11 // pred_check
        %p215 = pneg %p123
      $region26: #{policy_net_forward.1} parent=11 // pred_check_branch
        %217 = sbr.rel (%p215) target = $region28
      $region27: #{policy_net_forward.1} parent=11 // pred_region
        _
      $region28: #{policy_net_forward.1} parent=11 // pred_fallthru
        _
      // Predicated region
      $region29: #{policy_net_forward.1} parent=11 // pred_check
        %p218 = pneg %p144
      $region30: #{policy_net_forward.1} parent=11 // pred_check_branch
        %220 = sbr.rel (%p218) target = $region32
      $region31: #{policy_net_forward.1} parent=11 // pred_region
        _
      $region32: #{policy_net_forward.1} parent=11 // pred_fallthru
        _
      // Predicated region
      $region33: #{policy_net_forward.1} parent=11 // pred_check
        %p221 = pneg %p165
      $region34: #{policy_net_forward.1} parent=11 // pred_check_branch
        %223 = sbr.rel (%p221) target = $region36
      $region35: #{policy_net_forward.1} parent=11 // pred_region
        _
      $region36: #{policy_net_forward.1} parent=11 // pred_fallthru
        _
    $region12: #{policy_net_forward.1} parent=5 // pred_fallthru
      _
    %p224 = scmp.lt.s32.totalorder %s13, 2
    // Predicated region
    $region37: #{policy_net_forward.1} parent=5 // pred_check
      %p225 = pneg %p224
    $region38: #{policy_net_forward.1} parent=5 // pred_check_branch
      %227 = sbr.rel (%p225) target = $region40
    $region39: #{policy_net_forward.1} parent=5 // pred_region
      // Predicated region
      $region41: #{policy_net_forward.1} parent=39 // pred_check
        %p228 = pneg %p33
      $region42: #{policy_net_forward.1} parent=39 // pred_check_branch
        %230 = sbr.rel (%p228) target = $region44
      $region43: #{policy_net_forward.1} parent=39 // pred_region
        %p231 = scmp.lt.s32.totalorder %s13, 1
        %s232 = scalar_select %p231, %s13, 1
        %s233 = smul.addr %s232, 2
        %s234 = scalar_lea.vmem %s0, %s233
      $region44: #{policy_net_forward.1} parent=39 // pred_fallthru
        _
    $region40: #{policy_net_forward.1} parent=5 // pred_fallthru
      _
    %p235 = scmp.le.s32.totalorder 1, %s13
    %p236 = scmp.lt.s32.totalorder %s13, 3
    %p237 = pnand %p235, %p236
    %p238 = pneg %p237
    // Predicated region
    $region45: #{policy_net_forward.1} parent=5 // pred_check
      _
    $region46: #{policy_net_forward.1} parent=5 // pred_check_branch
      %240 = sbr.rel (%p237) target = $region48
    $region47: #{policy_net_forward.1} parent=5 // pred_region
      %s241 = ssub.s32 %s13, 1
      %p242 = scmp.lt.s32.totalorder %s18, 1
      %s243 = scalar_select %p242, %s18, 1
      %s244 = smul.addr %s243, 2
      %s245 = scalar_lea.vmem %s0, %s244
      %p246 = pneg %p39
      %p247 = pneg %p36
      %p248 = pneg %p60
      %p249 = pneg %p57
      %p250 = pneg %p81
      %p251 = pneg %p78
      %p252 = pneg %p102
      %p253 = pneg %p99
      %p254 = pneg %p123
      %p255 = pneg %p120
      %p256 = pneg %p144
      %p257 = pneg %p141
      %p258 = pneg %p165
      %p259 = pneg %p162
      %p260 = pneg %p191
      %p261 = pneg %p188
      %p262 = scmp.lt.s32.totalorder %s18, 1
      %s263 = scalar_select %p262, %s18, 1
      %s264 = smul.addr %s263, 2
      %s265 = scalar_lea.vmem %s7, %s264
      %p266 = scmp.lt.s32.totalorder %s18, 1
      %s267 = scalar_select %p266, %s18, 1
      %s268 = smul.addr %s267, 2
      %s269 = scalar_lea.vmem %s0, %s268
      %p270 = scmp.lt.s32.totalorder %s18, 1
      %s271 = scalar_select %p270, %s18, 1
      %s272 = smul.addr %s271, 2
      %s273 = scalar_lea.vmem %s7, %s272
      %v275 = vld [vmem:[%s269] sm:$0x3]
      %v276 = vld [vmem:[%s1] sm:$0xf]
      %v277 = vld [vmem:[%s1 + $0x4] sm:$0xf]
      %v278 = vld [vmem:[%s1 + $0x8] sm:$0xf]
      %v279 = vld [vmem:[%s1 + $0xc] sm:$0xf]
      %v280 = vld [vmem:[%s1 + $0x10] sm:$0xf]
      %v281 = vld [vmem:[%s1 + $0x14] sm:$0xf]
      %v282 = vld [vmem:[%s1 + $0x18] sm:$0xf]
      %v283 = vld [vmem:[%s1 + $0x1c] sm:$0xf]
      %v284 = vld [vmem:[%s2] sm:$0xff]
      %v285 = vld [vmem:[%s2 + $0x8] sm:$0xff]
      %v286 = vld [vmem:[%s2 + $0x10] sm:$0xff]
      %v287 = vld [vmem:[%s2 + $0x18] sm:$0xff]
      %v288 = vld [vmem:[%s2 + $0x20] sm:$0xff]
      %v289 = vld [vmem:[%s2 + $0x28] sm:$0xff]
      %v290 = vld [vmem:[%s2 + $0x30] sm:$0xff]
      %v291 = vld [vmem:[%s2 + $0x38] sm:$0xff]
      %293 = vset.pattern.permute.xlu0 0
      %294 = vperm.xlu0 %293, %v284
      %v295 = vpop.permute.xlu0 %294
      %298 = vset.pattern.permute.xlu0 0
      %299 = vperm.xlu0 %298, %v285
      %v300 = vpop.permute.xlu0 %299
      %303 = vset.pattern.permute.xlu0 0
      %304 = vperm.xlu0 %303, %v286
      %v305 = vpop.permute.xlu0 %304
      %308 = vset.pattern.permute.xlu0 0
      %309 = vperm.xlu0 %308, %v287
      %v310 = vpop.permute.xlu0 %309
      %313 = vset.pattern.permute.xlu0 0
      %314 = vperm.xlu0 %313, %v288
      %v315 = vpop.permute.xlu0 %314
      %318 = vset.pattern.permute.xlu0 0
      %319 = vperm.xlu0 %318, %v289
      %v320 = vpop.permute.xlu0 %319
      %323 = vset.pattern.permute.xlu0 0
      %324 = vperm.xlu0 %323, %v290
      %v325 = vpop.permute.xlu0 %324
      %328 = vset.pattern.permute.xlu0 0
      %329 = vperm.xlu0 %328, %v291
      %v330 = vpop.permute.xlu0 %329
      %v340 = vunpack.c.l.b16 %v276
      %v341 = vunpack.c.l.b16 %v277
      %v342 = vunpack.c.l.b16 %v278
      %v343 = vunpack.c.l.b16 %v279
      %v344 = vunpack.c.l.b16 %v280
      %v345 = vunpack.c.l.b16 %v281
      %v346 = vunpack.c.l.b16 %v282
      %v347 = vunpack.c.l.b16 %v283
      %v348 = vpack.c.b16 %v341, %v340
      %v349 = vpack.c.b16 %v343, %v342
      %v350 = vpack.c.b16 %v345, %v344
      %v351 = vpack.c.b16 %v347, %v346
      %vm352 = vcmask 31744
      %v354 = vsel %vm352, %v348, 0
      %v357 = vsel %vm352, %v349, 0
      %v360 = vsel %vm352, %v350, 0
      %v363 = vsel %vm352, %v351, 0
      %vm365 = vcmask 1041408
      %v367 = vsel %vm365, %v275, 0
      %369 = vmatprep.subr.bf16.mxu0 0
      %370 = vmatpush1.bf16.msra.mxu0 0
      %371 = vmatprep.subr.bf16.mxu0 0
      %372 = vmatpush1.bf16.msra.mxu0 0
      %373 = vmatprep.subr.bf16.mxu0 0
      %374 = vmatpush1.bf16.msra.mxu0 0
      %375 = vmatprep.subr.bf16.mxu0 0
      %376 = vmatpush1.bf16.msra.mxu0 0
      %377 = vmatprep.subr.bf16.mxu0 0
      %378 = vmatpush1.bf16.msra.mxu0 0
      %379 = vmatprep.subr.bf16.mxu0 0
      %380 = vmatpush1.bf16.msra.mxu0 0
      %381 = vmatprep.subr.bf16.mxu0 0
      %382 = vmatpush1.bf16.msra.mxu0 0
      %383 = vmatprep.subr.bf16.mxu0 0
      %384 = vmatpush1.bf16.msra.mxu0 %v367
      %385 = vmatprep.subr.bf16.mxu0 0
      %386 = vmatpush2.bf16.msra.mxu0 0
      %387 = vmatprep.subr.bf16.mxu0 0
      %388 = vmatpush2.bf16.msra.mxu0 0
      %389 = vmatprep.subr.bf16.mxu0 0
      %390 = vmatpush2.bf16.msra.mxu0 0
      %391 = vmatprep.subr.bf16.mxu0 0
      %392 = vmatpush2.bf16.msra.mxu0 0
      %393 = vmatprep.subr.bf16.mxu0 0
      %394 = vmatpush2.bf16.msra.mxu0 0
      %395 = vmatprep.subr.bf16.mxu0 0
      %396 = vmatpush2.bf16.msra.mxu0 0
      %397 = vmatprep.subr.bf16.mxu0 0
      %398 = vmatpush2.bf16.msra.mxu0 0
      %399 = vmatprep.subr.bf16.mxu0 0
      %400 = vmatpush2.bf16.msra.mxu0 0
      %401 = vmatprep.mubr.bf16.mxu0 0
      %402 = vmatmul.mubr.bf16.gmra.mxu0 %v354
      %v403 = vpop.f32.mrf.mxu0
      %v404 = vadd.f32 %v295, %v403
      %v405 = vpop.f32.mrf.mxu0
      %v406 = vpop.f32.mrf.mxu0
      %v407 = vadd.f32 %v300, %v406
      %v408 = vpop.f32.mrf.mxu0
      %409 = vmatprep.mubr.bf16.mxu0 0
      %410 = vmatmul.mubr.bf16.gmra.mxu0 %v357
      %v411 = vpop.f32.mrf.mxu0
      %v412 = vadd.f32 %v305, %v411
      %v413 = vpop.f32.mrf.mxu0
      %v414 = vpop.f32.mrf.mxu0
      %v415 = vadd.f32 %v310, %v414
      %v416 = vpop.f32.mrf.mxu0
      %417 = vmatprep.mubr.bf16.mxu0 0
      %418 = vmatmul.mubr.bf16.gmra.mxu0 %v360
      %v419 = vpop.f32.mrf.mxu0
      %v420 = vadd.f32 %v315, %v419
      %v421 = vpop.f32.mrf.mxu0
      %v422 = vpop.f32.mrf.mxu0
      %v423 = vadd.f32 %v320, %v422
      %v424 = vpop.f32.mrf.mxu0
      %425 = vmatprep.mubr.bf16.mxu0 0
      %426 = vmatmul.mubr.bf16.gmra.mxu0 %v363
      %v427 = vpop.f32.mrf.mxu0
      %v428 = vadd.f32 %v325, %v427
      %v429 = vpop.f32.mrf.mxu0
      %v430 = vpop.f32.mrf.mxu0
      %v431 = vadd.f32 %v330, %v430
      %v432 = vpop.f32.mrf.mxu0
      %433 = vdwg.mxu0
      %v434 = vmax.f32 %v404, 0.0
      %v435 = vmax.f32 %v407, 0.0
      %v436 = vmax.f32 %v412, 0.0
      %v437 = vmax.f32 %v415, 0.0
      %v438 = vmax.f32 %v420, 0.0
      %v439 = vmax.f32 %v423, 0.0
      %v440 = vmax.f32 %v428, 0.0
      %v441 = vmax.f32 %v431, 0.0
      %v442 = vpack.c.bf16 %v435, %v434
      %v443 = vpack.c.bf16 %v437, %v436
      %v444 = vpack.c.bf16 %v439, %v438
      %v445 = vpack.c.bf16 %v441, %v440
      %v446 = vld [vmem:[%s3] sm:$0xf]
      %v447 = vld [vmem:[%s3 + $0x4] sm:$0xf]
      %v448 = vld [vmem:[%s3 + $0x8] sm:$0xf]
      %v449 = vld [vmem:[%s3 + $0xc] sm:$0xf]
      %v450 = vld [vmem:[%s3 + $0x10] sm:$0xf]
      %v451 = vld [vmem:[%s3 + $0x14] sm:$0xf]
      %v452 = vld [vmem:[%s3 + $0x18] sm:$0xf]
      %v453 = vld [vmem:[%s3 + $0x1c] sm:$0xf]
      %v454 = vld [vmem:[%s4] sm:$0xff]
      %v455 = vld [vmem:[%s4 + $0x8] sm:$0xff]
      %v456 = vld [vmem:[%s4 + $0x10] sm:$0xff]
      %v457 = vld [vmem:[%s4 + $0x18] sm:$0xff]
      %v458 = vld [vmem:[%s4 + $0x20] sm:$0xff]
      %v459 = vld [vmem:[%s4 + $0x28] sm:$0xff]
      %v460 = vld [vmem:[%s4 + $0x30] sm:$0xff]
      %v461 = vld [vmem:[%s4 + $0x38] sm:$0xff]
      %463 = vset.pattern.permute.xlu0 0
      %464 = vperm.xlu0 %463, %v454
      %v465 = vpop.permute.xlu0 %464
      %468 = vset.pattern.permute.xlu0 0
      %469 = vperm.xlu0 %468, %v455
      %v470 = vpop.permute.xlu0 %469
      %473 = vset.pattern.permute.xlu0 0
      %474 = vperm.xlu0 %473, %v456
      %v475 = vpop.permute.xlu0 %474
      %478 = vset.pattern.permute.xlu0 0
      %479 = vperm.xlu0 %478, %v457
      %v480 = vpop.permute.xlu0 %479
      %483 = vset.pattern.permute.xlu0 0
      %484 = vperm.xlu0 %483, %v458
      %v485 = vpop.permute.xlu0 %484
      %488 = vset.pattern.permute.xlu0 0
      %489 = vperm.xlu0 %488, %v459
      %v490 = vpop.permute.xlu0 %489
      %493 = vset.pattern.permute.xlu0 0
      %494 = vperm.xlu0 %493, %v460
      %v495 = vpop.permute.xlu0 %494
      %498 = vset.pattern.permute.xlu0 0
      %499 = vperm.xlu0 %498, %v461
      %v500 = vpop.permute.xlu0 %499
      %v510 = vunpack.c.l.b16 %v446
      %v511 = vunpack.c.l.b16 %v447
      %v512 = vunpack.c.l.b16 %v448
      %v513 = vunpack.c.l.b16 %v449
      %v514 = vunpack.c.l.b16 %v450
      %v515 = vunpack.c.l.b16 %v451
      %v516 = vunpack.c.l.b16 %v452
      %v517 = vunpack.c.l.b16 %v453
      %v518 = vpack.c.b16 %v511, %v510
      %v519 = vpack.c.b16 %v513, %v512
      %v520 = vpack.c.b16 %v515, %v514
      %v521 = vpack.c.b16 %v517, %v516
      %vm522 = vcmask 523264
      %v524 = vsel %vm522, %v518, 0
      %v527 = vsel %vm522, %v519, 0
      %v530 = vsel %vm522, %v520, 0
      %v533 = vsel %vm522, %v521, 0
      %535 = vmatprep.subr.bf16.mxu0 0
      %536 = vmatpush1.bf16.msra.mxu0 0
      %537 = vmatprep.subr.bf16.mxu0 0
      %538 = vmatpush1.bf16.msra.mxu0 0
      %539 = vmatprep.subr.bf16.mxu0 0
      %540 = vmatpush1.bf16.msra.mxu0 0
      %541 = vmatprep.subr.bf16.mxu0 0
      %542 = vmatpush1.bf16.msra.mxu0 0
      %543 = vmatprep.subr.bf16.mxu0 0
      %544 = vmatpush1.bf16.msra.mxu0 %v445
      %545 = vmatprep.subr.bf16.mxu0 0
      %546 = vmatpush1.bf16.msra.mxu0 %v444
      %547 = vmatprep.subr.bf16.mxu0 0
      %548 = vmatpush1.bf16.msra.mxu0 %v443
      %549 = vmatprep.subr.bf16.mxu0 0
      %550 = vmatpush1.bf16.msra.mxu0 %v442
      %551 = vmatprep.subr.bf16.mxu0 0
      %552 = vmatpush2.bf16.msra.mxu0 0
      %553 = vmatprep.subr.bf16.mxu0 0
      %554 = vmatpush2.bf16.msra.mxu0 0
      %555 = vmatprep.subr.bf16.mxu0 0
      %556 = vmatpush2.bf16.msra.mxu0 0
      %557 = vmatprep.subr.bf16.mxu0 0
      %558 = vmatpush2.bf16.msra.mxu0 0
      %559 = vmatprep.subr.bf16.mxu0 0
      %560 = vmatpush2.bf16.msra.mxu0 0
      %561 = vmatprep.subr.bf16.mxu0 0
      %562 = vmatpush2.bf16.msra.mxu0 0
      %563 = vmatprep.subr.bf16.mxu0 0
      %564 = vmatpush2.bf16.msra.mxu0 0
      %565 = vmatprep.subr.bf16.mxu0 0
      %566 = vmatpush2.bf16.msra.mxu0 0
      %567 = vmatprep.mubr.bf16.mxu0 0
      %568 = vmatmul.mubr.bf16.gmra.mxu0 %v524
      %v569 = vpop.f32.mrf.mxu0
      %v570 = vadd.f32 %v465, %v569
      %v571 = vpop.f32.mrf.mxu0
      %v572 = vpop.f32.mrf.mxu0
      %v573 = vadd.f32 %v470, %v572
      %v574 = vpop.f32.mrf.mxu0
      %575 = vmatprep.mubr.bf16.mxu0 0
      %576 = vmatmul.mubr.bf16.gmra.mxu0 %v527
      %v577 = vpop.f32.mrf.mxu0
      %v578 = vadd.f32 %v475, %v577
      %v579 = vpop.f32.mrf.mxu0
      %v580 = vpop.f32.mrf.mxu0
      %v581 = vadd.f32 %v480, %v580
      %v582 = vpop.f32.mrf.mxu0
      %583 = vmatprep.mubr.bf16.mxu0 0
      %584 = vmatmul.mubr.bf16.gmra.mxu0 %v530
      %v585 = vpop.f32.mrf.mxu0
      %v586 = vadd.f32 %v485, %v585
      %v587 = vpop.f32.mrf.mxu0
      %v588 = vpop.f32.mrf.mxu0
      %v589 = vadd.f32 %v490, %v588
      %v590 = vpop.f32.mrf.mxu0
      %591 = vmatprep.mubr.bf16.mxu0 0
      %592 = vmatmul.mubr.bf16.gmra.mxu0 %v533
      %v593 = vpop.f32.mrf.mxu0
      %v594 = vadd.f32 %v495, %v593
      %v595 = vpop.f32.mrf.mxu0
      %v596 = vpop.f32.mrf.mxu0
      %v597 = vadd.f32 %v500, %v596
      %v598 = vpop.f32.mrf.mxu0
      %599 = vdwg.mxu0
      %v600 = vmax.f32 %v570, 0.0
      %v601 = vmax.f32 %v573, 0.0
      %v602 = vmax.f32 %v578, 0.0
      %v603 = vmax.f32 %v581, 0.0
      %v604 = vmax.f32 %v586, 0.0
      %v605 = vmax.f32 %v589, 0.0
      %v606 = vmax.f32 %v594, 0.0
      %v607 = vmax.f32 %v597, 0.0
      %v608 = vpack.c.bf16 %v601, %v600
      %v609 = vpack.c.bf16 %v603, %v602
      %v610 = vpack.c.bf16 %v605, %v604
      %v611 = vpack.c.bf16 %v607, %v606
      %v612 = vld [vmem:[%s5] sm:$0x1]
      %v613 = vld [vmem:[%s6] sm:$0x3]
      %615 = vset.pattern.permute.xlu0 0
      %616 = vperm.xlu0 %615, %v613
      %v617 = vpop.permute.xlu0 %616
      %v620 = vsel %vm522, %v612, 0
      %622 = vmatprep.subr.bf16.mxu0 0
      %623 = vmatpush1.bf16.msra.mxu0 0
      %624 = vmatprep.subr.bf16.mxu0 0
      %625 = vmatpush1.bf16.msra.mxu0 0
      %626 = vmatprep.subr.bf16.mxu0 0
      %627 = vmatpush1.bf16.msra.mxu0 0
      %628 = vmatprep.subr.bf16.mxu0 0
      %629 = vmatpush1.bf16.msra.mxu0 0
      %630 = vmatprep.subr.bf16.mxu0 0
      %631 = vmatpush1.bf16.msra.mxu0 %v611
      %632 = vmatprep.subr.bf16.mxu0 0
      %633 = vmatpush1.bf16.msra.mxu0 %v610
      %634 = vmatprep.subr.bf16.mxu0 0
      %635 = vmatpush1.bf16.msra.mxu0 %v609
      %636 = vmatprep.subr.bf16.mxu0 0
      %637 = vmatpush1.bf16.msra.mxu0 %v608
      %638 = vmatprep.subr.bf16.mxu0 0
      %639 = vmatpush2.bf16.msra.mxu0 0
      %640 = vmatprep.subr.bf16.mxu0 0
      %641 = vmatpush2.bf16.msra.mxu0 0
      %642 = vmatprep.subr.bf16.mxu0 0
      %643 = vmatpush2.bf16.msra.mxu0 0
      %644 = vmatprep.subr.bf16.mxu0 0
      %645 = vmatpush2.bf16.msra.mxu0 0
      %646 = vmatprep.subr.bf16.mxu0 0
      %647 = vmatpush2.bf16.msra.mxu0 0
      %648 = vmatprep.subr.bf16.mxu0 0
      %649 = vmatpush2.bf16.msra.mxu0 0
      %650 = vmatprep.subr.bf16.mxu0 0
      %651 = vmatpush2.bf16.msra.mxu0 0
      %652 = vmatprep.subr.bf16.mxu0 0
      %653 = vmatpush2.bf16.msra.mxu0 0
      %654 = vmatprep.mubr.bf16.mxu0 0
      %655 = vmatmul.mubr.bf16.gmra.mxu0 %v620
      %v656 = vpop.f32.mrf.mxu0
      %v657 = vadd.f32 %v617, %v656
      %v658 = vpop.f32.mrf.mxu0
      %v659 = vpop.f32.mrf.mxu0
      %v660 = vpop.f32.mrf.mxu0
      %661 = vdwg.mxu0
      %662 = vst [vmem:[%s273] sm:$0x3] %v657
      %p663 = scmp.lt.s32.totalorder %s18, 1
      %s664 = scalar_select %p663, %s18, 1
      %s665 = smul.addr %s664, 2
      %s666 = scalar_lea.vmem %s7, %s665
      // Predicated region
      $region49: #{policy_net_forward.1} parent=47 // pred_check
        %p667 = pneg %p188
      $region50: #{policy_net_forward.1} parent=47 // pred_check_branch
        %669 = sbr.rel (%p667) target = $region52
      $region51: #{policy_net_forward.1} parent=47 // pred_region
        _
      $region52: #{policy_net_forward.1} parent=47 // pred_fallthru
        _
    $region48: #{policy_net_forward.1} parent=5 // pred_fallthru
      _
    %p670 = scmp.le.s32.totalorder 2, %s13
    // Predicated region
    $region53: #{policy_net_forward.1} parent=5 // pred_check
      %p671 = pneg %p670
    $region54: #{policy_net_forward.1} parent=5 // pred_check_branch
      %673 = sbr.rel (%p671) target = $region56
    $region55: #{policy_net_forward.1} parent=5 // pred_region
      %s674 = ssub.s32 %s13, 2
      // Predicated region
      $region57: #{policy_net_forward.1} parent=55 // pred_check
        %p675 = pneg %p194
      $region58: #{policy_net_forward.1} parent=55 // pred_check_branch
        %677 = sbr.rel (%p675) target = $region60
      $region59: #{policy_net_forward.1} parent=55 // pred_region
        %p678 = scmp.lt.s32.totalorder %s19, 1
        %s679 = scalar_select %p678, %s19, 1
        %s680 = smul.addr %s679, 2
        %s681 = scalar_lea.vmem %s7, %s680
      $region60: #{policy_net_forward.1} parent=55 // pred_fallthru
        _
    $region56: #{policy_net_forward.1} parent=5 // pred_fallthru
      _
  $region6: #{policy_net_forward.1} parent=0 // loop_footer
    %s17 = sadd.s32 1, %s13
  $region7: #{policy_net_forward.1} parent=0 // loop_footer_branch
    %12 = sbr.rel target = $region3
  $region8: #{policy_net_forward.1} parent=0 // loop_exit
    _

</llo_original>
